<compile_context>
chip_gen: v5e
topology: v5e:2x2
jax: 0.10.0
libtpu: 0.0.40
codegen_flags: <defaults>
</compile_context>

<pallas_src>
import functools

import jax
import jax.numpy as jnp
from jax.experimental import pallas as pl
from jax.experimental.pallas import tpu as pltpu


# ----------------------------------------------------------------------------
# helpers
# ----------------------------------------------------------------------------
def _round_up(x, m):
    return ((x + m - 1) // m) * m


def _pad2d(a, rows, cols):
    r, c = a.shape
    if r == rows and c == cols:
        return a
    return jnp.pad(a, ((0, rows - r), (0, cols - c)))


def _choose_tile(dim, pref, align):
    """Pick a tile size <= pref dividing the (minimally padded) dim.

    Returns (tile, padded_dim).  Padding is avoided whenever possible so the
    wrapper-side pad / output-slice copies become no-ops.
    """
    dp = _round_up(dim, align)
    if dp <= pref:
        return dp, dp
    min_tile = max(align, pref // 4)
    for t in range(pref, min_tile - 1, -align):
        if dp % t == 0:
            return t, dp
    dp = _round_up(dp, pref)
    return pref, dp


# ----------------------------------------------------------------------------
# full-K matmul + bias, with optional fused LayerNorm prologue, exact-GELU
# epilogue and residual add.  No K grid axis -> no accumulator scratch.
# ----------------------------------------------------------------------------
def _matmul_kernel(*refs, activation, has_residual, has_ln, ln_eps):
    idx = 0
    x_ref = refs[idx]; idx += 1
    w_ref = refs[idx]; idx += 1
    b_ref = refs[idx]; idx += 1
    if has_ln:
        g_ref = refs[idx]; idx += 1
        lb_ref = refs[idx]; idx += 1
    if has_residual:
        res_ref = refs[idx]; idx += 1
    o_ref = refs[idx]

    x = x_ref[...]
    if has_ln:
        # fused pre-LayerNorm over the full (unpadded) feature dim K
        xf = x.astype(jnp.float32)
        mean = jnp.mean(xf, axis=-1, keepdims=True)
        xc = xf - mean
        var = jnp.mean(xc * xc, axis=-1, keepdims=True)
        xf = xc * jax.lax.rsqrt(var + ln_eps)
        x = (xf * g_ref[...] + lb_ref[...]).astype(jnp.bfloat16)
    else:
        x = x.astype(jnp.bfloat16)

    y = jnp.dot(x, w_ref[...].astype(jnp.bfloat16),
                preferred_element_type=jnp.float32)
    y = y + b_ref[...].astype(jnp.float32)
    if activation == "gelu":
        # timm's default nn.GELU is the exact (erf-based) GELU.
        y = jax.nn.gelu(y, approximate=False)
    if has_residual:
        y = y + res_ref[...].astype(jnp.float32)
    o_ref[...] = y.astype(o_ref.dtype)


def matmul_bias(x, w, b, *, activation=None, residual=None, ln_gb=None,
                ln_eps=1e-6, out_dtype=jnp.float32, tm_pref=256, tn_pref=256):
    """x: (M, K), w: (K, N), b: (N,) -> (M, N) in out_dtype.

    Grid is (M/tm, N/tn); each kernel invocation consumes the full K.  The K
    dimension is never padded (full-dim blocks), so the optional fused
    LayerNorm over K is exact and the patch matmul needs no K pad either.
    """
    M, K = x.shape
    Kw, N = w.shape
    assert K == Kw
    tm, Mp = _choose_tile(M, tm_pref, 8)
    tn, Np = _choose_tile(N, tn_pref, 128)
    has_ln = ln_gb is not None
    has_res = residual is not None

    xp = _pad2d(x, Mp, K)
    wp = _pad2d(w, K, Np)
    bp = _pad2d(b.reshape(1, N), 1, Np)

    in_specs = [
        pl.BlockSpec((tm, K), lambda i, j: (i, 0)),
        pl.BlockSpec((K, tn), lambda i, j: (0, j)),
        pl.BlockSpec((1, tn), lambda i, j: (0, j)),
    ]
    args = [xp, wp, bp]
    if has_ln:
        g, lb = ln_gb
        in_specs += [pl.BlockSpec((1, K), lambda i, j: (0, 0)),
                     pl.BlockSpec((1, K), lambda i, j: (0, 0))]
        args += [g.reshape(1, K).astype(jnp.float32),
                 lb.reshape(1, K).astype(jnp.float32)]
    if has_res:
        in_specs.append(pl.BlockSpec((tm, tn), lambda i, j: (i, j)))
        args.append(_pad2d(residual, Mp, Np))

    # scoped-VMEM estimate (double-buffered blocks); raise the limit so full-K
    # fc2 tiles (K=3072 at DeiT-Base) compile even on v5e's 16 MiB default.
    est = 2 * (tm * K * xp.dtype.itemsize + K * tn * wp.dtype.itemsize)
    est += 2 * tm * tn * jnp.dtype(out_dtype).itemsize
    if has_res:
        est += 2 * tm * tn * 4
    vmem_limit = int(max(32 * 2 ** 20, min(60 * 2 ** 20, 2 * est)))

    kern = functools.partial(_matmul_kernel, activation=activation,
                             has_residual=has_res, has_ln=has_ln,
                             ln_eps=ln_eps)
    out = pl.pallas_call(
        kern,
        out_shape=jax.ShapeDtypeStruct((Mp, Np), out_dtype),
        grid=(Mp // tm, Np // tn),
        in_specs=in_specs,
        out_specs=pl.BlockSpec((tm, tn), lambda i, j: (i, j)),
        compiler_params=pltpu.CompilerParams(
            dimension_semantics=("parallel", "parallel"),
            vmem_limit_bytes=vmem_limit),
    )(*args)
    if Mp != M or Np != N:
        out = out[:M, :N]
    return out


# ----------------------------------------------------------------------------
# row-tiled LayerNorm (eps=1e-6), fp32 math.  Only used for the final norm,
# which is applied to just the cls/dist tokens (2 rows per image).
# ----------------------------------------------------------------------------
def _layernorm_kernel(x_ref, g_ref, b_ref, o_ref, *, eps):
    x = x_ref[...].astype(jnp.float32)
    mean = jnp.mean(x, axis=-1, keepdims=True)
    xc = x - mean
    var = jnp.mean(xc * xc, axis=-1, keepdims=True)
    y = xc * jax.lax.rsqrt(var + eps)
    o_ref[...] = (y * g_ref[...] + b_ref[...]).astype(o_ref.dtype)


def layernorm(x, g, b, eps=1e-6, out_dtype=None, tm_pref=512):
    M, D = x.shape
    out_dtype = out_dtype if out_dtype is not None else x.dtype
    tm, Mp = _choose_tile(M, tm_pref, 8)
    xp = _pad2d(x, Mp, D)

    kern = functools.partial(_layernorm_kernel, eps=eps)
    out = pl.pallas_call(
        kern,
        out_shape=jax.ShapeDtypeStruct((Mp, D), out_dtype),
        grid=(Mp // tm,),
        in_specs=[
            pl.BlockSpec((tm, D), lambda i: (i, 0)),
            pl.BlockSpec((1, D), lambda i: (0, 0)),
            pl.BlockSpec((1, D), lambda i: (0, 0)),
        ],
        out_specs=pl.BlockSpec((tm, D), lambda i: (i, 0)),
        compiler_params=pltpu.CompilerParams(dimension_semantics=("parallel",)),
    )(xp, g.reshape(1, D), b.reshape(1, D))
    return out[:M] if Mp != M else out


# ----------------------------------------------------------------------------
# per-batch multi-head attention on the fused qkv slab
#   qkv: (B, S, 3D) laid out [Q | K | V], each D subdivided per head (timm
#        layout).  The 1/sqrt(Dh) scale is already folded into the Q weights.
#   out: (B, S, D) -- single lane-dense store per batch (no per-head stores).
# ----------------------------------------------------------------------------
def _attention_kernel(qkv_ref, o_ref, *, heads, head_dim):
    D = heads * head_dim
    outs = []
    for h in range(heads):  # static, small loop; heads are independent
        q = qkv_ref[0, :, h * head_dim:(h + 1) * head_dim]
        k = qkv_ref[0, :, D + h * head_dim:D + (h + 1) * head_dim]
        v = qkv_ref[0, :, 2 * D + h * head_dim:2 * D + (h + 1) * head_dim]
        # contract on the feature dim directly (no materialized k.T)
        s = jax.lax.dot_general(q, k, (((1,), (1,)), ((), ())),
                                preferred_element_type=jnp.float32)
        s = s - jnp.max(s, axis=-1, keepdims=True)
        p = jnp.exp(s)
        denom = jnp.sum(p, axis=-1, keepdims=True)
        # approx reciprocal (~1e-3 rel) routes the divide to the EUP slot.
        p = p * pl.reciprocal(denom, approx=True)
        o = jnp.dot(p.astype(jnp.bfloat16), v, preferred_element_type=jnp.float32)
        outs.append(o)
    # one full-width (S, D) lane-dense store
    o_ref[0] = jnp.concatenate(outs, axis=-1).astype(o_ref.dtype)


def attention(qkv, heads, head_dim, out_dtype=jnp.bfloat16):
    B, S, threeD = qkv.shape
    D = heads * head_dim
    kern = functools.partial(_attention_kernel, heads=heads, head_dim=head_dim)
    # TODO(synk): on v7x with B < 2 consider also tiling S so both TensorCores
    # get work; at B >= 2 the batch axis already feeds the second core.
    return pl.pallas_call(
        kern,
        out_shape=jax.ShapeDtypeStruct((B, S, D), out_dtype),
        grid=(B,),
        in_specs=[pl.BlockSpec((1, S, threeD), lambda bi: (bi, 0, 0))],
        out_specs=pl.BlockSpec((1, S, D), lambda bi: (bi, 0, 0)),
        compiler_params=pltpu.CompilerParams(dimension_semantics=("parallel",)),
    )(qkv)


# ----------------------------------------------------------------------------
# Parameter init (deterministic, synthetic).  Matmul weights stored in bf16;
# the attention scale is folded into the Q columns of qkv_w / qkv_b here (a
# weight-prep step would do the same when loading pretrained checkpoints).
# ----------------------------------------------------------------------------
def init_params(key, *, in_ch, patch, width, layers, heads, mlp_ratio, num_patches):
    D = width
    Dh = D // heads
    hidden = D * mlp_ratio
    seq = num_patches + 2  # cls + dist + patches
    scale = Dh ** -0.5

    def nrm(k, shape):
        return 0.02 * jax.random.normal(k, shape, dtype=jnp.float32)

    keys = jax.random.split(key, 4 + layers)
    params = {
        "patch_size": patch,
        "heads": heads,
        "head_dim": Dh,
        # conv weight (D, C, P, P) flattened to (C*P*P, D) for x @ W
        "patch_w": nrm(keys[0], (in_ch * patch * patch, D)).astype(jnp.bfloat16),
        "patch_b": jnp.zeros((D,), jnp.float32),
        "cls_token": nrm(keys[1], (1, 1, D)),
        "dist_token": nrm(keys[2], (1, 1, D)),
        "pos_embed": nrm(keys[3], (1, seq, D)),
        "ln_f_g": jnp.ones((D,), jnp.float32),
        "ln_f_b": jnp.zeros((D,), jnp.float32),
        "blocks": [],
    }
    for li in range(layers):
        bk = jax.random.split(keys[4 + li], 4)
        # qkv column layout = [Q | K | V], each D split per head (timm layout)
        qkv_w = nrm(bk[0], (D, 3 * D))
        qkv_w = qkv_w.at[:, :D].multiply(scale)          # fold attention scale
        qkv_b = jnp.zeros((3 * D,), jnp.float32)
        qkv_b = qkv_b.at[:D].multiply(scale)
        params["blocks"].append({
            "ln1_g": jnp.ones((D,), jnp.float32),
            "ln1_b": jnp.zeros((D,), jnp.float32),
            "qkv_w": qkv_w.astype(jnp.bfloat16),
            "qkv_b": qkv_b,
            "proj_w": nrm(bk[1], (D, D)).astype(jnp.bfloat16),
            "proj_b": jnp.zeros((D,), jnp.float32),
            "ln2_g": jnp.ones((D,), jnp.float32),
            "ln2_b": jnp.zeros((D,), jnp.float32),
            "fc1_w": nrm(bk[2], (D, hidden)).astype(jnp.bfloat16),
            "fc1_b": jnp.zeros((hidden,), jnp.float32),
            "fc2_w": nrm(bk[3], (hidden, D)).astype(jnp.bfloat16),
            "fc2_b": jnp.zeros((D,), jnp.float32),
        })
    return params


# ----------------------------------------------------------------------------
# Forward pass == DeiTImageHead.forward
# ----------------------------------------------------------------------------
def deit_image_head_forward(params, images, normalized=False):
    B, C, H, W = images.shape
    P = params["patch_size"]
    heads = params["heads"]
    Dh = params["head_dim"]
    D = heads * Dh
    nH, nW = H // P, W // P
    nP = nH * nW

    # --- patch embedding: Conv2d(C, D, kernel=P, stride=P) as im2col + matmul
    patches = images.reshape(B, C, nH, P, nW, P)
    patches = patches.transpose(0, 2, 4, 1, 3, 5).reshape(B * nP, C * P * P)
    patches = patches.astype(jnp.bfloat16)               # halve x DMA traffic
    x = matmul_bias(patches, params["patch_w"], params["patch_b"],
                    out_dtype=jnp.float32)
    x = x.reshape(B, nP, D)

    # --- prepend cls + distillation tokens, add positional embedding (fp32)
    cls = jnp.broadcast_to(params["cls_token"], (B, 1, D))
    dist = jnp.broadcast_to(params["dist_token"], (B, 1, D))
    x = jnp.concatenate([cls, dist, x], axis=1)
    x = x + params["pos_embed"]
    S = x.shape[1]

    # --- transformer blocks (pre-LN, MHSA with qkv bias, MLP ratio 4, GELU)
    for blk in params["blocks"]:
        x2d = x.reshape(B * S, D)                                 # fp32 residual
        # ln1 fused into the qkv matmul prologue
        qkv = matmul_bias(x2d, blk["qkv_w"], blk["qkv_b"],
                          ln_gb=(blk["ln1_g"], blk["ln1_b"]),
                          out_dtype=jnp.bfloat16)                 # (B*S, 3D)
        attn = attention(qkv.reshape(B, S, 3 * D), heads, Dh)     # (B, S, D) bf16
        x2d = matmul_bias(attn.reshape(B * S, D), blk["proj_w"], blk["proj_b"],
                          residual=x2d, out_dtype=jnp.float32)    # + residual fused

        # ln2 fused into the fc1 matmul prologue, exact GELU in the epilogue
        h = matmul_bias(x2d, blk["fc1_w"], blk["fc1_b"],
                        ln_gb=(blk["ln2_g"], blk["ln2_b"]),
                        activation="gelu", out_dtype=jnp.bfloat16)
        x2d = matmul_bias(h, blk["fc2_w"], blk["fc2_b"],
                          residual=x2d, out_dtype=jnp.float32)    # + residual fused
        x = x2d.reshape(B, S, D)

    # --- final norm only on the cls / distillation tokens, then average
    toks = x[:, :2].reshape(B * 2, D)
    toks = layernorm(toks, params["ln_f_g"], params["ln_f_b"],
                     out_dtype=jnp.float32).reshape(B, 2, D)
    z = (toks[:, 0] + toks[:, 1]) / 2
    if normalized:
        z = z / jnp.linalg.norm(z, axis=-1, keepdims=True)
    return z


# ----------------------------------------------------------------------------
if __name__ == "__main__":
    # Small config consistent with the module: cfg.resolution=16, cfg.patch_size=8,
    # cfg.width=64 (=> heads = 64//64 = 1), cfg.layers=2, mlp_ratio=4.
    key = jax.random.PRNGKey(0)
    k_img, k_par = jax.random.split(key)

    images = jax.random.normal(k_img, (2, 3, 16, 16), dtype=jnp.float32)  # NCHW
    params = init_params(
        k_par, in_ch=3, patch=8, width=64, layers=2, heads=1, mlp_ratio=4,
        num_patches=(16 // 8) * (16 // 8),
    )

    z = deit_image_head_forward(params, images, normalized=False)
    z = jax.block_until_ready(z)
    assert z.shape == (2, 64) and z.dtype == jnp.float32
    assert bool(jnp.all(jnp.isfinite(z)))
    print("KERNEL_OK")
</pallas_src>

<mosaic_0001>
module attributes {stable_mosaic.version = 11 : i64} {
  func.func @_matmul_kernel(%arg0: i32, %arg1: i32, %arg2: memref<8x192xbf16, #tpu.memory_space<vmem>>, %arg3: memref<192x128xbf16, #tpu.memory_space<vmem>>, %arg4: memref<1x128xf32, #tpu.memory_space<vmem>>, %arg5: memref<8x128xf32, #tpu.memory_space<vmem>>) attributes {dimension_semantics = [#tpu.dimension_semantics<parallel>, #tpu.dimension_semantics<parallel>], iteration_bounds = array<i64: 1, 1>, scalar_prefetch = 0 : i64, scratch_operands = 0 : i64, tpu.core_type = #tpu.core_type<tc>, window_params = [{transform_indices = @transform_0, window_bounds = array<i64: 8, 192>}, {transform_indices = @transform_1, window_bounds = array<i64: 192, 128>}, {transform_indices = @transform_2, window_bounds = array<i64: 1, 128>}, {transform_indices = @transform_3, window_bounds = array<i64: 8, 128>}]} {
    %c0 = arith.constant 0 : index
    %c0_0 = arith.constant 0 : index
    %0 = vector.load %arg2[%c0, %c0_0] : memref<8x192xbf16, #tpu.memory_space<vmem>>, vector<8x192xbf16>
    %c0_1 = arith.constant 0 : index
    %c0_2 = arith.constant 0 : index
    %1 = vector.load %arg3[%c0_1, %c0_2] : memref<192x128xbf16, #tpu.memory_space<vmem>>, vector<192x128xbf16>
    %cst = arith.constant dense<0.000000e+00> : vector<8x128xf32>
    %2 = tpu.matmul %0, %1, %cst {dimension_numbers = #tpu.dot_dimension_numbers<[1], [0], [0], [1], [0, 0, 1, 1], [], []>} : vector<8x192xbf16>, vector<192x128xbf16>, vector<8x128xf32> -> vector<8x128xf32>
    %c0_3 = arith.constant 0 : index
    %c0_4 = arith.constant 0 : index
    %3 = vector.load %arg4[%c0_3, %c0_4] : memref<1x128xf32, #tpu.memory_space<vmem>>, vector<1x128xf32>
    %4 = vector.broadcast %3 : vector<1x128xf32> to vector<8x128xf32>
    %5 = arith.addf %2, %4 : vector<8x128xf32>
    %c0_5 = arith.constant 0 : index
    %c0_6 = arith.constant 0 : index
    %6 = vector.load %arg5[%c0_5, %c0_6] : memref<8x128xf32, #tpu.memory_space<vmem>>, vector<8x128xf32>
    tpu.vector_store %arg5[%c0_5, %c0_6], %5 {strides = array<i32>} : memref<8x128xf32, #tpu.memory_space<vmem>>, vector<8x128xf32>,
    return
  }
  func.func @transform_0(%arg0: i32, %arg1: i32) -> (i32, i32) {
    %c0_i32 = arith.constant 0 : i32
    %c0_i32_0 = arith.constant 0 : i32
    return %arg0, %c0_i32 : i32, i32
  }
  func.func @transform_1(%arg0: i32, %arg1: i32) -> (i32, i32) {
    %c0_i32 = arith.constant 0 : i32
    %c0_i32_0 = arith.constant 0 : i32
    return %c0_i32, %arg1 : i32, i32
  }
  func.func @transform_2(%arg0: i32, %arg1: i32) -> (i32, i32) {
    %c0_i32 = arith.constant 0 : i32
    %c0_i32_0 = arith.constant 0 : i32
    return %c0_i32, %arg1 : i32, i32
  }
  func.func @transform_3(%arg0: i32, %arg1: i32) -> (i32, i32) {
    %c0_i32 = arith.constant 0 : i32
    return %arg0, %arg1 : i32, i32
  }
}

</mosaic_0001>

<llo_original>
// kernel: tpu_custom_call.1
$region0: #{tpu_custom_call.1}
  #allocation0 [shape = 'u32[]', space=smem, size = 0x4, offset = 0x4, fixed_abs, tag = 'smem constant byte address 0x4 - core index']
  #allocation1 [shape = 'u32[72,128]{1,0:T(1,128)}', space=vmem, size = 0x9000, scoped, tag = 'internal scratch']
  %s0 = inlined_call_operand.hbm [shape: bf16[8,192], index: 0, kind: input, shape index: {}]
  %s1 = inlined_call_operand.hbm [shape: bf16[192,128], index: 1, kind: input, shape index: {}]
  %s2 = inlined_call_operand.vmem [shape: f32[1,128], index: 2, kind: input, shape index: {}]
  %s3 = inlined_call_operand.hbm [shape: f32[8,128], index: 3, kind: output, shape index: {}]
  %s4 = sld [smem:[#allocation0]]
  $region30: #{tpu_custom_call.1} parent=0
    _
  %s6 = ssub.s32 1, %s4
  %s7 = scalar_select 0, %s6, %s4
  $region1: #{tpu_custom_call.1} parent=0
    #allocation2 [shape = 'u8[4096]{0}', space=vmem, size = 0x1000, scoped, tag = 'input window, operand 0, single buffered']
    #allocation3 [shape = 's32[1]{0}', space=sflag, size = 0x4, scoped, tag = 'scoped memory for tpu_custom_call.1']
    #allocation4 [shape = 's32[1]{0}', space=sflag, size = 0x4, scoped, tag = 'scoped memory for tpu_custom_call.1']
    #allocation5 [shape = 'u8[49152]{0}', space=vmem, size = 0xc000, scoped, tag = 'input window, operand 1, single buffered']
    #allocation6 [shape = 's32[1]{0}', space=sflag, size = 0x4, scoped, tag = 'scoped memory for tpu_custom_call.1']
    #allocation7 [shape = 'u8[4096]{0}', space=vmem, size = 0x1000, scoped, tag = 'output window, operand 0, single buffered']
    %8 = vsyncpa [#allocation3], 0
    %9 = vsyncpa [#allocation6], 0
    %10 = vsyncpa [#allocation4], 0
    // Predicated region
    $region2: #{tpu_custom_call.1} parent=1 // pred_check
      _
    $region3: #{tpu_custom_call.1} parent=1 // pred_check_branch
      %12 = sbr.rel (0) target = $region5
    $region4: #{tpu_custom_call.1} parent=1 // pred_region
      %14 = vsyncadd [#allocation3], 0
      %s16 = sshll.u32 %s0, 4
      %s17 = int_to_ptr.hbm [resolvable:$true] %s16
      %s18 = sshll.u32 [#allocation2], 4
      %s19 = int_to_ptr.vmem [resolvable:$true] %s18
      %21 = dma.hbm_to_vmem [thread:$0]  %s17, 128, %s19, [#allocation3]
    $region5: #{tpu_custom_call.1} parent=1 // pred_fallthru
      _
    // Predicated region
    $region6: #{tpu_custom_call.1} parent=1 // pred_check
      _
    $region7: #{tpu_custom_call.1} parent=1 // pred_check_branch
      %23 = sbr.rel (0) target = $region9
    $region8: #{tpu_custom_call.1} parent=1 // pred_region
      %25 = vsyncadd [#allocation6], 0
      %s26 = sshll.u32 %s1, 4
      %s27 = int_to_ptr.hbm [resolvable:$true] %s26
      %s28 = sshll.u32 [#allocation5], 4
      %s29 = int_to_ptr.vmem [resolvable:$true] %s28
      %34 = dma.hbm_to_vmem [thread:$0]  %s27, 1536, %s29, [#allocation6], 64, 64, 4
    $region9: #{tpu_custom_call.1} parent=1 // pred_fallthru
      _
    // Predicated region
    $region10: #{tpu_custom_call.1} parent=1 // pred_check
      _
    $region11: #{tpu_custom_call.1} parent=1 // pred_check_branch
      %36 = sbr.rel (0) target = $region13
    $region12: #{tpu_custom_call.1} parent=1 // pred_region
      _
    $region13: #{tpu_custom_call.1} parent=1 // pred_fallthru
      _
    // Predicated region
    $region14: #{tpu_custom_call.1} parent=1 // pred_check
      _
    $region15: #{tpu_custom_call.1} parent=1 // pred_check_branch
      %38 = sbr.rel (0) target = $region17
    $region16: #{tpu_custom_call.1} parent=1 // pred_region
      %40 = dma.done [#allocation3], 128
    $region17: #{tpu_custom_call.1} parent=1 // pred_fallthru
      _
    // Predicated region
    $region18: #{tpu_custom_call.1} parent=1 // pred_check
      _
    $region19: #{tpu_custom_call.1} parent=1 // pred_check_branch
      %42 = sbr.rel (0) target = $region21
    $region20: #{tpu_custom_call.1} parent=1 // pred_region
      %44 = dma.done [#allocation6], 1536
    $region21: #{tpu_custom_call.1} parent=1 // pred_fallthru
      _
    %v46 = vld [vmem:[#allocation2] sm:$0xff]
    %v47 = vld [vmem:[#allocation5] sm:$0xf]
    %v48 = vld [vmem:[#allocation5 + $0x4] sm:$0xf]
    %v49 = vld [vmem:[#allocation5 + $0x8] sm:$0xf]
    %v50 = vld [vmem:[#allocation5 + $0xc] sm:$0xf]
    %v51 = vld [vmem:[#allocation5 + $0x10] sm:$0xf]
    %v52 = vld [vmem:[#allocation5 + $0x14] sm:$0xf]
    %v53 = vld [vmem:[#allocation5 + $0x18] sm:$0xf]
    %v54 = vld [vmem:[#allocation5 + $0x1c] sm:$0xf]
    %v55 = vld [vmem:[#allocation5 + $0x20] sm:$0xf]
    %v56 = vld [vmem:[#allocation5 + $0x24] sm:$0xf]
    %v57 = vld [vmem:[#allocation5 + $0x28] sm:$0xf]
    %v58 = vld [vmem:[#allocation5 + $0x2c] sm:$0xf]
    %v59 = vld [vmem:[#allocation5 + $0x30] sm:$0xf]
    %v60 = vld [vmem:[#allocation5 + $0x34] sm:$0xf]
    %v61 = vld [vmem:[#allocation5 + $0x38] sm:$0xf]
    %v62 = vld [vmem:[#allocation5 + $0x3c] sm:$0xf]
    %v63 = vld [vmem:[#allocation5 + $0x40] sm:$0xf]
    %v64 = vld [vmem:[#allocation5 + $0x44] sm:$0xf]
    %v65 = vld [vmem:[#allocation5 + $0x48] sm:$0xf]
    %v66 = vld [vmem:[#allocation5 + $0x4c] sm:$0xf]
    %v67 = vld [vmem:[#allocation5 + $0x50] sm:$0xf]
    %v68 = vld [vmem:[#allocation5 + $0x54] sm:$0xf]
    %v69 = vld [vmem:[#allocation5 + $0x58] sm:$0xf]
    %v70 = vld [vmem:[#allocation5 + $0x5c] sm:$0xf]
    %v71 = vld [vmem:[%s2] sm:$0x1]
    %v73 = vperm.slane %v71, 0
    %v76 = vunpack.c.l.b16 %v46
    %v77 = vunpack.c.h.b16 %v46
    %v78 = vpack.c.b16 %v76, %v76
    %v79 = vpack.c.b16 %v77, %v77
    %v105 = vunpack.c.l.b16 %v47
    %v106 = vunpack.c.l.b16 %v48
    %v107 = vunpack.c.l.b16 %v49
    %v108 = vunpack.c.l.b16 %v50
    %v109 = vunpack.c.l.b16 %v51
    %v110 = vunpack.c.l.b16 %v52
    %v111 = vunpack.c.l.b16 %v53
    %v112 = vunpack.c.l.b16 %v54
    %v113 = vunpack.c.l.b16 %v55
    %v114 = vunpack.c.l.b16 %v56
    %v115 = vunpack.c.l.b16 %v57
    %v116 = vunpack.c.l.b16 %v58
    %v117 = vunpack.c.l.b16 %v59
    %v118 = vunpack.c.l.b16 %v60
    %v119 = vunpack.c.l.b16 %v61
    %v120 = vunpack.c.l.b16 %v62
    %v121 = vunpack.c.l.b16 %v63
    %v122 = vunpack.c.l.b16 %v64
    %v123 = vunpack.c.l.b16 %v65
    %v124 = vunpack.c.l.b16 %v66
    %v125 = vunpack.c.l.b16 %v67
    %v126 = vunpack.c.l.b16 %v68
    %v127 = vunpack.c.l.b16 %v69
    %v128 = vunpack.c.l.b16 %v70
    %v129 = vpack.c.b16 %v106, %v105
    %v130 = vpack.c.b16 %v108, %v107
    %v131 = vpack.c.b16 %v110, %v109
    %v132 = vpack.c.b16 %v112, %v111
    %v133 = vpack.c.b16 %v114, %v113
    %v134 = vpack.c.b16 %v116, %v115
    %v135 = vpack.c.b16 %v118, %v117
    %v136 = vpack.c.b16 %v120, %v119
    %v137 = vpack.c.b16 %v122, %v121
    %v138 = vpack.c.b16 %v124, %v123
    %v139 = vpack.c.b16 %v126, %v125
    %v140 = vpack.c.b16 %v128, %v127
    %vm153 = vcmask 523264
    %v155 = vsel %vm153, %v79, 0
    %157 = vmatpush.bf16.msra.mxu0 %v136
    %158 = vmatpush.bf16.msra.mxu0 %v135
    %159 = vmatpush.bf16.msra.mxu0 %v134
    %160 = vmatpush.bf16.msra.mxu0 %v133
    %161 = vmatpush.bf16.msra.mxu0 %v132
    %162 = vmatpush.bf16.msra.mxu0 %v131
    %163 = vmatpush.bf16.msra.mxu0 %v130
    %164 = vmatpush.bf16.msra.mxu0 %v129
    %165 = vmatmul.bf16.gmra.mxu0 %v78
    %v166 = vpop.f32.mrf.mxu0
    %v167 = vadd.f32 %v73, %v166
    %v168 = vpop.f32.mrf.mxu0
    %169 = vdwg.mxu0
    %170 = vmatpush.bf16.msra.mxu0 0
    %171 = vmatpush.bf16.msra.mxu0 0
    %172 = vmatpush.bf16.msra.mxu0 0
    %173 = vmatpush.bf16.msra.mxu0 0
    %174 = vmatpush.bf16.msra.mxu0 %v140
    %175 = vmatpush.bf16.msra.mxu0 %v139
    %176 = vmatpush.bf16.msra.mxu0 %v138
    %177 = vmatpush.bf16.msra.mxu0 %v137
    %178 = vmatmul.bf16.gmra.mxu0 %v155
    %v179 = vpop.f32.mrf.mxu0
    %v180 = vadd.f32 %v167, %v179
    %v181 = vpop.f32.mrf.mxu0
    %182 = vdwg.mxu0
    %183 = vst [vmem:[#allocation7] sm:$0xff] %v180
    // Predicated region
    $region22: #{tpu_custom_call.1} parent=1 // pred_check
      _
    $region23: #{tpu_custom_call.1} parent=1 // pred_check_branch
      %185 = sbr.rel (0) target = $region25
    $region24: #{tpu_custom_call.1} parent=1 // pred_region
      %187 = vsyncadd [#allocation4], 0
      %s189 = sshll.u32 [#allocation7], 4
      %s190 = int_to_ptr.vmem [resolvable:$true] %s189
      %s191 = sshll.u32 %s3, 4
      %s192 = int_to_ptr.hbm [resolvable:$true] %s191
      %194 = dma.vmem_to_hbm [thread:$0]  %s190, 128, %s192, [#allocation4]
    $region25: #{tpu_custom_call.1} parent=1 // pred_fallthru
      _
    // Predicated region
    $region26: #{tpu_custom_call.1} parent=1 // pred_check
      _
    $region27: #{tpu_custom_call.1} parent=1 // pred_check_branch
      %196 = sbr.rel (0) target = $region29
    $region28: #{tpu_custom_call.1} parent=1 // pred_region
      %198 = dma.done [#allocation4], 128
    $region29: #{tpu_custom_call.1} parent=1 // pred_fallthru
      _
    %199 = vsyncpa [#allocation3], 1
    %200 = vsyncpa [#allocation6], 1
    %201 = vsyncpa [#allocation4], 1

</llo_original>
